<compile_context>
chip_gen: v7x
topology: tpu7x:2x2x1
jax: 0.10.0
libtpu: 0.0.40
codegen_flags: <defaults>
</compile_context>

<pallas_src>
import functools

import jax
import jax.numpy as jnp
from jax.experimental import pallas as pl
from jax.experimental.pallas import tpu as pltpu

# hyp.MIN_LOG / hyp.MAX_LOG (standard SAC values)
MIN_LOG = -20.0
MAX_LOG = 2.0


def _round_up(x, m):
    return ((x + m - 1) // m) * m


def _choose_tb(B, block_b):
    """Pick the batch (lane-axis) tile.

    * B <= 128: one full-extent block (always a legal block shape).
    * otherwise: a multiple of 128, capped by block_b, and clamped to roughly
      half the batch so the grid has >= 2 steps (v7x: both TensorCores busy).
    """
    if B <= 128:
        return B
    tb = min(block_b, _round_up(B, 128))
    half = _round_up(pl.cdiv(B, 2), 128)
    return max(128, min(tb, half))


def policy_fwd_kernel(s_ref, w1_ref, b1_ref, w2_ref, b2_ref, w3_ref, b3_ref,
                      out_ref, *, a_dim):
    # Transposed compute: batch on the lane axis -> lane-dense, unmasked
    # loads/stores.  Matmuls accumulate in f32 on the MXU; bias-add / ReLU /
    # clamp run in f32 on the VPU, then cast back to the weight dtype so the
    # next dot stays on the MXU fast path (bf16 on v5e/v6e/v7x).
    x = jnp.dot(w1_ref[...], s_ref[...], preferred_element_type=jnp.float32)
    x = jnp.maximum(x + b1_ref[...], 0.0).astype(w2_ref.dtype)
    x = jnp.dot(w2_ref[...], x, preferred_element_type=jnp.float32)
    x = jnp.maximum(x + b2_ref[...], 0.0).astype(w3_ref.dtype)
    # fused heads: rows [0, a) = mean, rows [a, 2a) = log_std.
    y = jnp.dot(w3_ref[...], x, preferred_element_type=jnp.float32) + b3_ref[...]
    # clamp only the log_std rows (sublane index >= a_dim); cheap VPU filler.
    row = jax.lax.broadcasted_iota(jnp.int32, y.shape, 0)
    y = jnp.where(row >= a_dim, jnp.clip(y, MIN_LOG, MAX_LOG), y)
    out_ref[...] = y.astype(out_ref.dtype)


def prepare_params(params, compute_dtype=jnp.bfloat16):
    """One-time layout prep (hoisted out of the per-call path).

    Torch layout W (out, in), b (out,) is kept as-is for the weights (the
    kernel computes the network transposed, batch on lanes); the two heads are
    fused along the output (sublane) axis and biases become (out, 1) f32
    columns.
    """
    w1 = params["w1"].astype(compute_dtype)
    w2 = params["w2"].astype(compute_dtype)
    w3 = jnp.concatenate([params["w3a"], params["w3b"]], axis=0).astype(compute_dtype)
    b1 = params["b1"][:, None].astype(jnp.float32)
    b2 = params["b2"][:, None].astype(jnp.float32)
    b3 = jnp.concatenate([params["b3a"], params["b3b"]])[:, None].astype(jnp.float32)
    return {"w1": w1, "b1": b1, "w2": w2, "b2": b2, "w3": w3, "b3": b3}


@functools.partial(jax.jit, static_argnames=("block_b",))
def policy_forward(s, prepared, *, block_b=4096):
    """s: (B, s_dim). prepared: output of prepare_params(). Returns (mean, log_std) f32."""
    B, s_dim = s.shape
    h_dim = prepared["w1"].shape[0]
    two_a = prepared["w3"].shape[0]
    a_dim = two_a // 2

    tb = _choose_tb(B, block_b)
    grid = (pl.cdiv(B, tb),)          # ragged last block handled by Pallas (no jnp.pad)

    # Batch on lanes: the network is computed transposed inside the kernel.
    s_t = s.astype(prepared["w1"].dtype).T          # (s_dim, B)

    resident = lambda i: (0, 0)       # weights/biases stay VMEM-resident across steps

    out = pl.pallas_call(
        functools.partial(policy_fwd_kernel, a_dim=a_dim),
        out_shape=jax.ShapeDtypeStruct((two_a, B), jnp.float32),
        grid=grid,
        in_specs=[
            pl.BlockSpec((s_dim, tb), lambda i: (0, i)),     # state tile (pipelined)
            pl.BlockSpec((h_dim, s_dim), resident),          # W1 (out, in)
            pl.BlockSpec((h_dim, 1), resident),              # b1 column
            pl.BlockSpec((h_dim, h_dim), resident),          # W2
            pl.BlockSpec((h_dim, 1), resident),              # b2 column
            pl.BlockSpec((two_a, h_dim), resident),          # fused [W3a; W3b]
            pl.BlockSpec((two_a, 1), resident),              # fused [b3a; b3b] column
        ],
        out_specs=pl.BlockSpec((two_a, tb), lambda i: (0, i)),
        compiler_params=pltpu.CompilerParams(
            dimension_semantics=("parallel",)),   # v7x: 2 TCs split the batch axis
    )(s_t, prepared["w1"], prepared["b1"], prepared["w2"], prepared["b2"],
      prepared["w3"], prepared["b3"])

    out = out.T                                   # (B, 2*a) f32
    return out[:, :a_dim], out[:, a_dim:]


def init_params(key, s_dim, h_dim, a_dim):
    """Deterministic synthetic init (PyTorch nn.Linear layout: W (out,in), b (out,))."""
    ks = jax.random.split(key, 8)

    def lin(kw, kb, fan_in, fan_out):
        bound = 1.0 / jnp.sqrt(fan_in)
        w = jax.random.uniform(kw, (fan_out, fan_in), jnp.float32, -bound, bound)
        b = jax.random.uniform(kb, (fan_out,), jnp.float32, -bound, bound)
        return w, b

    w1, b1 = lin(ks[0], ks[1], s_dim, h_dim)
    w2, b2 = lin(ks[2], ks[3], h_dim, h_dim)
    w3a, b3a = lin(ks[4], ks[5], h_dim, a_dim)
    w3b, b3b = lin(ks[6], ks[7], h_dim, a_dim)
    return {"w1": w1, "b1": b1, "w2": w2, "b2": b2,
            "w3a": w3a, "b3a": b3a, "w3b": w3b, "b3b": b3b}


def reference_forward(s, p):
    x = jnp.maximum(s @ p["w1"].T + p["b1"], 0.0)
    x = jnp.maximum(x @ p["w2"].T + p["b2"], 0.0)
    mean = x @ p["w3a"].T + p["b3a"]
    log_std = jnp.clip(x @ p["w3b"].T + p["b3b"], MIN_LOG, MAX_LOG)
    return mean, log_std


if __name__ == "__main__":
    s_dim, h_dim, a_dim = 16, 32, 4

    key = jax.random.PRNGKey(0)
    k_s1, k_s2, k_s3, k_p = jax.random.split(key, 4)
    params = init_params(k_p, s_dim, h_dim, a_dim)

    prepared_bf16 = prepare_params(params)                 # default: bf16 MXU fast path
    prepared_f32 = prepare_params(params, jnp.float32)     # tightly-checked f32 path

    # --- small batch (single grid step, full-extent lane block) -----------------
    s_small = jax.random.normal(k_s1, (8, s_dim), jnp.float32)
    mean_ref, log_std_ref = reference_forward(s_small, params)

    mean_f32, log_std_f32 = policy_forward(s_small, prepared_f32)
    jax.block_until_ready((mean_f32, log_std_f32))
    assert jnp.allclose(mean_f32, mean_ref, atol=1e-5, rtol=1e-5)
    assert jnp.allclose(log_std_f32, log_std_ref, atol=1e-5, rtol=1e-5)

    mean_bf, log_std_bf = policy_forward(s_small, prepared_bf16)
    jax.block_until_ready((mean_bf, log_std_bf))
    assert jnp.allclose(mean_bf, mean_ref, atol=5e-2, rtol=5e-2)
    assert jnp.allclose(log_std_bf, log_std_ref, atol=5e-2, rtol=5e-2)

    # --- medium batch: >=2 grid steps + ragged last block, resident weights -----
    s_med = jax.random.normal(k_s2, (200, s_dim), jnp.float32)
    mean_mref, log_std_mref = reference_forward(s_med, params)

    mean_m32, log_std_m32 = policy_forward(s_med, prepared_f32)
    jax.block_until_ready((mean_m32, log_std_m32))
    assert mean_m32.shape == (200, a_dim) and log_std_m32.shape == (200, a_dim)
    assert jnp.allclose(mean_m32, mean_mref, atol=1e-5, rtol=1e-5)
    assert jnp.allclose(log_std_m32, log_std_mref, atol=1e-5, rtol=1e-5)

    mean_mbf, log_std_mbf = policy_forward(s_med, prepared_bf16)
    jax.block_until_ready((mean_mbf, log_std_mbf))
    assert jnp.allclose(mean_mbf, mean_mref, atol=5e-2, rtol=5e-2)
    assert jnp.allclose(log_std_mbf, log_std_mref, atol=5e-2, rtol=5e-2)

    # --- larger batch, small block_b: many grid steps + ragged final block ------
    s_big = jax.random.normal(k_s3, (600, s_dim), jnp.float32)
    mean_bref, log_std_bref = reference_forward(s_big, params)

    mean_b, log_std_b = policy_forward(s_big, prepared_bf16, block_b=128)
    jax.block_until_ready((mean_b, log_std_b))
    assert mean_b.shape == (600, a_dim) and log_std_b.shape == (600, a_dim)
    assert jnp.allclose(mean_b, mean_bref, atol=5e-2, rtol=5e-2)
    assert jnp.allclose(log_std_b, log_std_bref, atol=5e-2, rtol=5e-2)

    # TODO(synk): sample_action (Normal sampling / tanh squash / log_prob) stays in
    # plain JAX; only the forward() hot path is a Pallas kernel.
    print("KERNEL_OK")
</pallas_src>

<mosaic_0001>
module attributes {stable_mosaic.version = 11 : i64} {
  func.func @policy_fwd_kernel(%arg0: i32, %arg1: memref<16x8xf32, #tpu.memory_space<vmem>>, %arg2: memref<32x16xf32, #tpu.memory_space<vmem>>, %arg3: memref<32x1xf32, #tpu.memory_space<vmem>>, %arg4: memref<32x32xf32, #tpu.memory_space<vmem>>, %arg5: memref<32x1xf32, #tpu.memory_space<vmem>>, %arg6: memref<8x32xf32, #tpu.memory_space<vmem>>, %arg7: memref<8x1xf32, #tpu.memory_space<vmem>>, %arg8: memref<8x8xf32, #tpu.memory_space<vmem>>) attributes {dimension_semantics = [#tpu.dimension_semantics<parallel>], iteration_bounds = array<i64: 1>, scalar_prefetch = 0 : i64, scratch_operands = 0 : i64, tpu.core_type = #tpu.core_type<tc>, window_params = [{transform_indices = @transform_0, window_bounds = array<i64: 16, 8>}, {pipeline_mode = #tpu.pipeline_mode<synchronous>, transform_indices = @transform_1, window_bounds = array<i64: 32, 16>}, {pipeline_mode = #tpu.pipeline_mode<synchronous>, transform_indices = @transform_2, window_bounds = array<i64: 32, 1>}, {pipeline_mode = #tpu.pipeline_mode<synchronous>, transform_indices = @transform_3, window_bounds = array<i64: 32, 32>}, {pipeline_mode = #tpu.pipeline_mode<synchronous>, transform_indices = @transform_4, window_bounds = array<i64: 32, 1>}, {pipeline_mode = #tpu.pipeline_mode<synchronous>, transform_indices = @transform_5, window_bounds = array<i64: 8, 32>}, {pipeline_mode = #tpu.pipeline_mode<synchronous>, transform_indices = @transform_6, window_bounds = array<i64: 8, 1>}, {transform_indices = @transform_7, window_bounds = array<i64: 8, 8>}]} {
    %c0 = arith.constant 0 : index
    %c0_0 = arith.constant 0 : index
    %0 = vector.load %arg2[%c0, %c0_0] : memref<32x16xf32, #tpu.memory_space<vmem>>, vector<32x16xf32>
    %c0_1 = arith.constant 0 : index
    %c0_2 = arith.constant 0 : index
    %1 = vector.load %arg1[%c0_1, %c0_2] : memref<16x8xf32, #tpu.memory_space<vmem>>, vector<16x8xf32>
    %cst = arith.constant dense<0.000000e+00> : vector<32x8xf32>
    %2 = tpu.matmul %0, %1, %cst {dimension_numbers = #tpu.dot_dimension_numbers<[1], [0], [0], [1], [0, 0, 1, 1], [], []>} : vector<32x16xf32>, vector<16x8xf32>, vector<32x8xf32> -> vector<32x8xf32>
    %c0_3 = arith.constant 0 : index
    %c0_4 = arith.constant 0 : index
    %3 = vector.load %arg3[%c0_3, %c0_4] : memref<32x1xf32, #tpu.memory_space<vmem>>, vector<32x1xf32>
    %4 = vector.broadcast %3 : vector<32x1xf32> to vector<32x8xf32>
    %5 = arith.addf %2, %4 : vector<32x8xf32>
    %cst_5 = arith.constant 0.000000e+00 : f32
    %6 = vector.broadcast %cst_5 : f32 to vector<32x8xf32>
    %7 = arith.maximumf %5, %6 : vector<32x8xf32>
    %c0_6 = arith.constant 0 : index
    %c0_7 = arith.constant 0 : index
    %8 = vector.load %arg4[%c0_6, %c0_7] : memref<32x32xf32, #tpu.memory_space<vmem>>, vector<32x32xf32>
    %cst_8 = arith.constant dense<0.000000e+00> : vector<32x8xf32>
    %9 = tpu.matmul %8, %7, %cst_8 {dimension_numbers = #tpu.dot_dimension_numbers<[1], [0], [0], [1], [0, 0, 1, 1], [], []>} : vector<32x32xf32>, vector<32x8xf32>, vector<32x8xf32> -> vector<32x8xf32>
    %c0_9 = arith.constant 0 : index
    %c0_10 = arith.constant 0 : index
    %10 = vector.load %arg5[%c0_9, %c0_10] : memref<32x1xf32, #tpu.memory_space<vmem>>, vector<32x1xf32>
    %11 = vector.broadcast %10 : vector<32x1xf32> to vector<32x8xf32>
    %12 = arith.addf %9, %11 : vector<32x8xf32>
    %cst_11 = arith.constant 0.000000e+00 : f32
    %13 = vector.broadcast %cst_11 : f32 to vector<32x8xf32>
    %14 = arith.maximumf %12, %13 : vector<32x8xf32>
    %c0_12 = arith.constant 0 : index
    %c0_13 = arith.constant 0 : index
    %15 = vector.load %arg6[%c0_12, %c0_13] : memref<8x32xf32, #tpu.memory_space<vmem>>, vector<8x32xf32>
    %cst_14 = arith.constant dense<0.000000e+00> : vector<8x8xf32>
    %16 = tpu.matmul %15, %14, %cst_14 {dimension_numbers = #tpu.dot_dimension_numbers<[1], [0], [0], [1], [0, 0, 1, 1], [], []>} : vector<8x32xf32>, vector<32x8xf32>, vector<8x8xf32> -> vector<8x8xf32>
    %c0_15 = arith.constant 0 : index
    %c0_16 = arith.constant 0 : index
    %17 = vector.load %arg7[%c0_15, %c0_16] : memref<8x1xf32, #tpu.memory_space<vmem>>, vector<8x1xf32>
    %18 = vector.broadcast %17 : vector<8x1xf32> to vector<8x8xf32>
    %19 = arith.addf %16, %18 : vector<8x8xf32>
    %20 = tpu.iota {dimensions = array<i32: 0>} : vector<8x8xi32>
    %c4_i32 = arith.constant 4 : i32
    %21 = vector.broadcast %c4_i32 : i32 to vector<8x8xi32>
    %22 = arith.cmpi sge, %20, %21 : vector<8x8xi32>
    %cst_17 = arith.constant -2.000000e+01 : f32
    %cst_18 = arith.constant 2.000000e+00 : f32
    %23 = vector.broadcast %cst_17 : f32 to vector<8x8xf32>
    %24 = arith.maximumf %23, %19 : vector<8x8xf32>
    %25 = vector.broadcast %cst_18 : f32 to vector<8x8xf32>
    %26 = arith.minimumf %25, %24 : vector<8x8xf32>
    %27 = arith.select %22, %26, %19 : vector<8x8xi1>, vector<8x8xf32>
    %c0_19 = arith.constant 0 : index
    %c0_20 = arith.constant 0 : index
    %28 = vector.load %arg8[%c0_19, %c0_20] : memref<8x8xf32, #tpu.memory_space<vmem>>, vector<8x8xf32>
    tpu.vector_store %arg8[%c0_19, %c0_20], %27 {strides = array<i32>} : memref<8x8xf32, #tpu.memory_space<vmem>>, vector<8x8xf32>,
    return
  }
  func.func @transform_0(%arg0: i32) -> (i32, i32) {
    %c0_i32 = arith.constant 0 : i32
    %c0_i32_0 = arith.constant 0 : i32
    return %c0_i32, %arg0 : i32, i32
  }
  func.func @transform_1(%arg0: i32) -> (i32, i32) {
    %c0_i32 = arith.constant 0 : i32
    %c0_i32_0 = arith.constant 0 : i32
    %c0_i32_1 = arith.constant 0 : i32
    return %c0_i32, %c0_i32_0 : i32, i32
  }
  func.func @transform_2(%arg0: i32) -> (i32, i32) {
    %c0_i32 = arith.constant 0 : i32
    %c0_i32_0 = arith.constant 0 : i32
    %c0_i32_1 = arith.constant 0 : i32
    return %c0_i32, %c0_i32_0 : i32, i32
  }
  func.func @transform_3(%arg0: i32) -> (i32, i32) {
    %c0_i32 = arith.constant 0 : i32
    %c0_i32_0 = arith.constant 0 : i32
    %c0_i32_1 = arith.constant 0 : i32
    return %c0_i32, %c0_i32_0 : i32, i32
  }
  func.func @transform_4(%arg0: i32) -> (i32, i32) {
    %c0_i32 = arith.constant 0 : i32
    %c0_i32_0 = arith.constant 0 : i32
    %c0_i32_1 = arith.constant 0 : i32
    return %c0_i32, %c0_i32_0 : i32, i32
  }
  func.func @transform_5(%arg0: i32) -> (i32, i32) {
    %c0_i32 = arith.constant 0 : i32
    %c0_i32_0 = arith.constant 0 : i32
    %c0_i32_1 = arith.constant 0 : i32
    return %c0_i32, %c0_i32_0 : i32, i32
  }
  func.func @transform_6(%arg0: i32) -> (i32, i32) {
    %c0_i32 = arith.constant 0 : i32
    %c0_i32_0 = arith.constant 0 : i32
    %c0_i32_1 = arith.constant 0 : i32
    return %c0_i32, %c0_i32_0 : i32, i32
  }
  func.func @transform_7(%arg0: i32) -> (i32, i32) {
    %c0_i32 = arith.constant 0 : i32
    %c0_i32_0 = arith.constant 0 : i32
    return %c0_i32, %arg0 : i32, i32
  }
}

</mosaic_0001>

<llo_original>
// kernel: policy_forward.1
$region0: #{policy_forward.1}
  #allocation0 [shape = 'u32[]', space=smem, size = 0x4, offset = 0x4, fixed_abs, tag = 'smem constant byte address 0x4 - core index']
  #allocation1 [shape = 'u32[144,128]{1,0:T(1,128)}', space=vmem, size = 0x12000, scoped, tag = 'internal scratch']
  %s0 = inlined_call_operand.vmem [shape: f32[16,8], index: 0, kind: input, shape index: {}]
  %s1 = inlined_call_operand.vmem [shape: f32[32,16], index: 1, kind: input, shape index: {}]
  %s2 = inlined_call_operand.vmem [shape: f32[32,1], index: 2, kind: input, shape index: {}]
  %s3 = inlined_call_operand.vmem [shape: f32[32,32], index: 3, kind: input, shape index: {}]
  %s4 = inlined_call_operand.vmem [shape: f32[32,1], index: 4, kind: input, shape index: {}]
  %s5 = inlined_call_operand.vmem [shape: f32[8,32], index: 5, kind: input, shape index: {}]
  %s6 = inlined_call_operand.vmem [shape: f32[8,1], index: 6, kind: input, shape index: {}]
  %s7 = inlined_call_operand.vmem [shape: f32[8,8], index: 7, kind: output, shape index: {}]
  %s8 = sld [smem:[#allocation0]]
  $region38: #{policy_forward.1} parent=0
    _
  %s10 = ssub.s32 1, %s8
  %s11 = scalar_select 0, %s10, %s8
  // Predicated region
  $region2: #{policy_forward.1} parent=0 // pred_check
    _
  $region3: #{policy_forward.1} parent=0 // pred_check_branch
    %13 = sbr.rel (0) target = $region5
  $region4: #{policy_forward.1} parent=0 // pred_region
    _
  $region5: #{policy_forward.1} parent=0 // pred_fallthru
    _
  // Predicated region
  $region6: #{policy_forward.1} parent=0 // pred_check
    _
  $region7: #{policy_forward.1} parent=0 // pred_check_branch
    %15 = sbr.rel (0) target = $region9
  $region8: #{policy_forward.1} parent=0 // pred_region
    _
  $region9: #{policy_forward.1} parent=0 // pred_fallthru
    _
  // Predicated region
  $region10: #{policy_forward.1} parent=0 // pred_check
    _
  $region11: #{policy_forward.1} parent=0 // pred_check_branch
    %17 = sbr.rel (0) target = $region13
  $region12: #{policy_forward.1} parent=0 // pred_region
    _
  $region13: #{policy_forward.1} parent=0 // pred_fallthru
    _
  // Predicated region
  $region14: #{policy_forward.1} parent=0 // pred_check
    _
  $region15: #{policy_forward.1} parent=0 // pred_check_branch
    %19 = sbr.rel (0) target = $region17
  $region16: #{policy_forward.1} parent=0 // pred_region
    _
  $region17: #{policy_forward.1} parent=0 // pred_fallthru
    _
  // Predicated region
  $region18: #{policy_forward.1} parent=0 // pred_check
    _
  $region19: #{policy_forward.1} parent=0 // pred_check_branch
    %21 = sbr.rel (0) target = $region21
  $region20: #{policy_forward.1} parent=0 // pred_region
    _
  $region21: #{policy_forward.1} parent=0 // pred_fallthru
    _
  // Predicated region
  $region22: #{policy_forward.1} parent=0 // pred_check
    _
  $region23: #{policy_forward.1} parent=0 // pred_check_branch
    %23 = sbr.rel (0) target = $region25
  $region24: #{policy_forward.1} parent=0 // pred_region
    _
  $region25: #{policy_forward.1} parent=0 // pred_fallthru
    _
  // Predicated region
  $region26: #{policy_forward.1} parent=0 // pred_check
    _
  $region27: #{policy_forward.1} parent=0 // pred_check_branch
    %25 = sbr.rel (0) target = $region29
  $region28: #{policy_forward.1} parent=0 // pred_region
    _
  $region29: #{policy_forward.1} parent=0 // pred_fallthru
    _
  %v26 = vld [vmem:[%s1] sm:$0xff]
  %v27 = vld [vmem:[%s1 + $0x8] sm:$0xff]
  %v28 = vld [vmem:[%s1 + $0x10] sm:$0xff]
  %v29 = vld [vmem:[%s1 + $0x18] sm:$0xff]
  %v30 = vld [vmem:[%s0] sm:$0xff]
  %v31 = vld [vmem:[%s0 + $0x8] sm:$0xff]
  %v32 = vld [vmem:[%s2] sm:$0xff]
  %v33 = vld [vmem:[%s2 + $0x8] sm:$0xff]
  %v34 = vld [vmem:[%s2 + $0x10] sm:$0xff]
  %v35 = vld [vmem:[%s2 + $0x18] sm:$0xff]
  %37 = vset.pattern.permute.xlu0 0
  %38 = vperm.xlu0 %37, %v32
  %v39 = vpop.permute.xlu0 %38
  %42 = vset.pattern.permute.xlu0 0
  %43 = vperm.xlu0 %42, %v33
  %v44 = vpop.permute.xlu0 %43
  %47 = vset.pattern.permute.xlu0 0
  %48 = vperm.xlu0 %47, %v34
  %v49 = vpop.permute.xlu0 %48
  %52 = vset.pattern.permute.xlu0 0
  %53 = vperm.xlu0 %52, %v35
  %v54 = vpop.permute.xlu0 %53
  %vm56 = vcmask 130048
  %v58 = vsel %vm56, %v26, 0
  %v61 = vsel %vm56, %v27, 0
  %v64 = vsel %vm56, %v28, 0
  %v67 = vsel %vm56, %v29, 0
  %69 = vmatprep.subr.mxu0 0.0
  %70 = vmatpush1.msra.mxu0 %v30
  %71 = vmatprep.subr.mxu0 0.0
  %72 = vmatpush1.msra.mxu0 %v31
  %73 = vmatprep.subr.mxu0 0.0
  %74 = vmatpush1.msra.mxu0 0.0
  %75 = vmatprep.subr.mxu0 0.0
  %76 = vmatpush1.msra.mxu0 0.0
  %77 = vmatprep.subr.mxu0 0.0
  %78 = vmatpush1.msra.mxu0 0.0
  %79 = vmatprep.subr.mxu0 0.0
  %80 = vmatpush1.msra.mxu0 0.0
  %81 = vmatprep.subr.mxu0 0.0
  %82 = vmatpush1.msra.mxu0 0.0
  %83 = vmatprep.subr.mxu0 0.0
  %84 = vmatpush1.msra.mxu0 0.0
  %85 = vmatprep.subr.mxu0 0.0
  %86 = vmatpush1.msra.mxu0 0.0
  %87 = vmatprep.subr.mxu0 0.0
  %88 = vmatpush1.msra.mxu0 0.0
  %89 = vmatprep.subr.mxu0 0.0
  %90 = vmatpush1.msra.mxu0 0.0
  %91 = vmatprep.subr.mxu0 0.0
  %92 = vmatpush1.msra.mxu0 0.0
  %93 = vmatprep.subr.mxu0 0.0
  %94 = vmatpush1.msra.mxu0 0.0
  %95 = vmatprep.subr.mxu0 0.0
  %96 = vmatpush1.msra.mxu0 0.0
  %97 = vmatprep.subr.mxu0 0.0
  %98 = vmatpush1.msra.mxu0 0.0
  %99 = vmatprep.subr.mxu0 0.0
  %100 = vmatpush1.msra.mxu0 0.0
  %101 = vmatprep.subr.mxu0 0.0
  %102 = vmatpush1.msra.mxu0 0.0
  %103 = vmatprep.subr.mxu0 0.0
  %104 = vmatpush1.msra.mxu0 0.0
  %105 = vmatprep.subr.mxu0 0.0
  %106 = vmatpush1.msra.mxu0 0.0
  %107 = vmatprep.subr.mxu0 0.0
  %108 = vmatpush1.msra.mxu0 0.0
  %109 = vmatprep.subr.mxu0 0.0
  %110 = vmatpush1.msra.mxu0 0.0
  %111 = vmatprep.subr.mxu0 0.0
  %112 = vmatpush1.msra.mxu0 0.0
  %113 = vmatprep.subr.mxu0 0.0
  %114 = vmatpush1.msra.mxu0 0.0
  %115 = vmatprep.subr.mxu0 0.0
  %116 = vmatpush1.msra.mxu0 0.0
  %117 = vmatprep.subr.mxu0 0.0
  %118 = vmatpush1.msra.mxu0 0.0
  %119 = vmatprep.subr.mxu0 0.0
  %120 = vmatpush1.msra.mxu0 0.0
  %121 = vmatprep.subr.mxu0 0.0
  %122 = vmatpush1.msra.mxu0 0.0
  %123 = vmatprep.subr.mxu0 0.0
  %124 = vmatpush1.msra.mxu0 0.0
  %125 = vmatprep.subr.mxu0 0.0
  %126 = vmatpush1.msra.mxu0 0.0
  %127 = vmatprep.subr.mxu0 0.0
  %128 = vmatpush1.msra.mxu0 0.0
  %129 = vmatprep.subr.mxu0 0.0
  %130 = vmatpush1.msra.mxu0 0.0
  %131 = vmatprep.subr.mxu0 0.0
  %132 = vmatpush1.msra.mxu0 0.0
  %133 = vmatprep.mubr.f32.mxu0 0.0
  %134 = vmatmul.mubr.f32.gmra.mrb[0].mxu0 %v58
  %v135 = vpop.f32.mrb[0].mxu0
  %v136 = vadd.f32 %v39, %v135
  %v137 = vpop.f32.mrb[0].mxu0
  %138 = vmatprep.mubr.f32.mxu0 0.0
  %139 = vmatmul.mubr.f32.gmra.mrb[0].mxu0 %v61
  %v140 = vpop.f32.mrb[0].mxu0
  %v141 = vadd.f32 %v44, %v140
  %v142 = vpop.f32.mrb[0].mxu0
  %143 = vmatprep.mubr.f32.mxu0 0.0
  %144 = vmatmul.mubr.f32.gmra.mrb[0].mxu0 %v64
  %v145 = vpop.f32.mrb[0].mxu0
  %v146 = vadd.f32 %v49, %v145
  %v147 = vpop.f32.mrb[0].mxu0
  %148 = vmatprep.mubr.f32.mxu0 0.0
  %149 = vmatmul.mubr.f32.gmra.mrb[0].mxu0 %v67
  %v150 = vpop.f32.mrb[0].mxu0
  %v151 = vadd.f32 %v54, %v150
  %v152 = vpop.f32.mrb[0].mxu0
  %153 = vdwg.mxu0
  %v154 = vmax.f32 %v136, 0.0
  %v155 = vmax.f32 %v141, 0.0
  %v156 = vmax.f32 %v146, 0.0
  %v157 = vmax.f32 %v151, 0.0
  %v158 = vld [vmem:[%s3] sm:$0xff]
  %v159 = vld [vmem:[%s3 + $0x8] sm:$0xff]
  %v160 = vld [vmem:[%s3 + $0x10] sm:$0xff]
  %v161 = vld [vmem:[%s3 + $0x18] sm:$0xff]
  %v162 = vld [vmem:[%s4] sm:$0xff]
  %v163 = vld [vmem:[%s4 + $0x8] sm:$0xff]
  %v164 = vld [vmem:[%s4 + $0x10] sm:$0xff]
  %v165 = vld [vmem:[%s4 + $0x18] sm:$0xff]
  %167 = vset.pattern.permute.xlu0 0
  %168 = vperm.xlu0 %167, %v162
  %v169 = vpop.permute.xlu0 %168
  %172 = vset.pattern.permute.xlu0 0
  %173 = vperm.xlu0 %172, %v163
  %v174 = vpop.permute.xlu0 %173
  %177 = vset.pattern.permute.xlu0 0
  %178 = vperm.xlu0 %177, %v164
  %v179 = vpop.permute.xlu0 %178
  %182 = vset.pattern.permute.xlu0 0
  %183 = vperm.xlu0 %182, %v165
  %v184 = vpop.permute.xlu0 %183
  %vm186 = vcmask 261120
  %v188 = vsel %vm186, %v158, 0
  %v191 = vsel %vm186, %v159, 0
  %v194 = vsel %vm186, %v160, 0
  %v197 = vsel %vm186, %v161, 0
  %199 = vmatprep.subr.mxu0 0.0
  %200 = vmatpush1.msra.mxu0 %v154
  %201 = vmatprep.subr.mxu0 0.0
  %202 = vmatpush1.msra.mxu0 %v155
  %203 = vmatprep.subr.mxu0 0.0
  %204 = vmatpush1.msra.mxu0 %v156
  %205 = vmatprep.subr.mxu0 0.0
  %206 = vmatpush1.msra.mxu0 %v157
  %207 = vmatprep.subr.mxu0 0.0
  %208 = vmatpush1.msra.mxu0 0.0
  %209 = vmatprep.subr.mxu0 0.0
  %210 = vmatpush1.msra.mxu0 0.0
  %211 = vmatprep.subr.mxu0 0.0
  %212 = vmatpush1.msra.mxu0 0.0
  %213 = vmatprep.subr.mxu0 0.0
  %214 = vmatpush1.msra.mxu0 0.0
  %215 = vmatprep.subr.mxu0 0.0
  %216 = vmatpush1.msra.mxu0 0.0
  %217 = vmatprep.subr.mxu0 0.0
  %218 = vmatpush1.msra.mxu0 0.0
  %219 = vmatprep.subr.mxu0 0.0
  %220 = vmatpush1.msra.mxu0 0.0
  %221 = vmatprep.subr.mxu0 0.0
  %222 = vmatpush1.msra.mxu0 0.0
  %223 = vmatprep.subr.mxu0 0.0
  %224 = vmatpush1.msra.mxu0 0.0
  %225 = vmatprep.subr.mxu0 0.0
  %226 = vmatpush1.msra.mxu0 0.0
  %227 = vmatprep.subr.mxu0 0.0
  %228 = vmatpush1.msra.mxu0 0.0
  %229 = vmatprep.subr.mxu0 0.0
  %230 = vmatpush1.msra.mxu0 0.0
  %231 = vmatprep.subr.mxu0 0.0
  %232 = vmatpush1.msra.mxu0 0.0
  %233 = vmatprep.subr.mxu0 0.0
  %234 = vmatpush1.msra.mxu0 0.0
  %235 = vmatprep.subr.mxu0 0.0
  %236 = vmatpush1.msra.mxu0 0.0
  %237 = vmatprep.subr.mxu0 0.0
  %238 = vmatpush1.msra.mxu0 0.0
  %239 = vmatprep.subr.mxu0 0.0
  %240 = vmatpush1.msra.mxu0 0.0
  %241 = vmatprep.subr.mxu0 0.0
  %242 = vmatpush1.msra.mxu0 0.0
  %243 = vmatprep.subr.mxu0 0.0
  %244 = vmatpush1.msra.mxu0 0.0
  %245 = vmatprep.subr.mxu0 0.0
  %246 = vmatpush1.msra.mxu0 0.0
  %247 = vmatprep.subr.mxu0 0.0
  %248 = vmatpush1.msra.mxu0 0.0
  %249 = vmatprep.subr.mxu0 0.0
  %250 = vmatpush1.msra.mxu0 0.0
  %251 = vmatprep.subr.mxu0 0.0
  %252 = vmatpush1.msra.mxu0 0.0
  %253 = vmatprep.subr.mxu0 0.0
  %254 = vmatpush1.msra.mxu0 0.0
  %255 = vmatprep.subr.mxu0 0.0
  %256 = vmatpush1.msra.mxu0 0.0
  %257 = vmatprep.subr.mxu0 0.0
  %258 = vmatpush1.msra.mxu0 0.0
  %259 = vmatprep.subr.mxu0 0.0
  %260 = vmatpush1.msra.mxu0 0.0
  %261 = vmatprep.subr.mxu0 0.0
  %262 = vmatpush1.msra.mxu0 0.0
  %263 = vmatprep.mubr.f32.mxu0 0.0
  %264 = vmatmul.mubr.f32.gmra.mrb[0].mxu0 %v188
  %v265 = vpop.f32.mrb[0].mxu0
  %v266 = vadd.f32 %v169, %v265
  %v267 = vpop.f32.mrb[0].mxu0
  %268 = vmatprep.mubr.f32.mxu0 0.0
  %269 = vmatmul.mubr.f32.gmra.mrb[0].mxu0 %v191
  %v270 = vpop.f32.mrb[0].mxu0
  %v271 = vadd.f32 %v174, %v270
  %v272 = vpop.f32.mrb[0].mxu0
  %273 = vmatprep.mubr.f32.mxu0 0.0
  %274 = vmatmul.mubr.f32.gmra.mrb[0].mxu0 %v194
  %v275 = vpop.f32.mrb[0].mxu0
  %v276 = vadd.f32 %v179, %v275
  %v277 = vpop.f32.mrb[0].mxu0
  %278 = vmatprep.mubr.f32.mxu0 0.0
  %279 = vmatmul.mubr.f32.gmra.mrb[0].mxu0 %v197
  %v280 = vpop.f32.mrb[0].mxu0
  %v281 = vadd.f32 %v184, %v280
  %v282 = vpop.f32.mrb[0].mxu0
  %283 = vdwg.mxu0
  %v284 = vmax.f32 %v266, 0.0
  %v285 = vmax.f32 %v271, 0.0
  %v286 = vmax.f32 %v276, 0.0
  %v287 = vmax.f32 %v281, 0.0
  %v288 = vld [vmem:[%s5] sm:$0xff]
  %v289 = vld [vmem:[%s6] sm:$0xff]
  %291 = vset.pattern.permute.xlu0 0
  %292 = vperm.xlu0 %291, %v289
  %v293 = vpop.permute.xlu0 %292
  %v296 = vsel %vm186, %v288, 0
  %298 = vmatprep.subr.mxu0 0.0
  %299 = vmatpush1.msra.mxu0 %v284
  %300 = vmatprep.subr.mxu0 0.0
  %301 = vmatpush1.msra.mxu0 %v285
  %302 = vmatprep.subr.mxu0 0.0
  %303 = vmatpush1.msra.mxu0 %v286
  %304 = vmatprep.subr.mxu0 0.0
  %305 = vmatpush1.msra.mxu0 %v287
  %306 = vmatprep.subr.mxu0 0.0
  %307 = vmatpush1.msra.mxu0 0.0
  %308 = vmatprep.subr.mxu0 0.0
  %309 = vmatpush1.msra.mxu0 0.0
  %310 = vmatprep.subr.mxu0 0.0
  %311 = vmatpush1.msra.mxu0 0.0
  %312 = vmatprep.subr.mxu0 0.0
  %313 = vmatpush1.msra.mxu0 0.0
  %314 = vmatprep.subr.mxu0 0.0
  %315 = vmatpush1.msra.mxu0 0.0
  %316 = vmatprep.subr.mxu0 0.0
  %317 = vmatpush1.msra.mxu0 0.0
  %318 = vmatprep.subr.mxu0 0.0
  %319 = vmatpush1.msra.mxu0 0.0
  %320 = vmatprep.subr.mxu0 0.0
  %321 = vmatpush1.msra.mxu0 0.0
  %322 = vmatprep.subr.mxu0 0.0
  %323 = vmatpush1.msra.mxu0 0.0
  %324 = vmatprep.subr.mxu0 0.0
  %325 = vmatpush1.msra.mxu0 0.0
  %326 = vmatprep.subr.mxu0 0.0
  %327 = vmatpush1.msra.mxu0 0.0
  %328 = vmatprep.subr.mxu0 0.0
  %329 = vmatpush1.msra.mxu0 0.0
  %330 = vmatprep.subr.mxu0 0.0
  %331 = vmatpush1.msra.mxu0 0.0
  %332 = vmatprep.subr.mxu0 0.0
  %333 = vmatpush1.msra.mxu0 0.0
  %334 = vmatprep.subr.mxu0 0.0
  %335 = vmatpush1.msra.mxu0 0.0
  %336 = vmatprep.subr.mxu0 0.0
  %337 = vmatpush1.msra.mxu0 0.0
  %338 = vmatprep.subr.mxu0 0.0
  %339 = vmatpush1.msra.mxu0 0.0
  %340 = vmatprep.subr.mxu0 0.0
  %341 = vmatpush1.msra.mxu0 0.0
  %342 = vmatprep.subr.mxu0 0.0
  %343 = vmatpush1.msra.mxu0 0.0
  %344 = vmatprep.subr.mxu0 0.0
  %345 = vmatpush1.msra.mxu0 0.0
  %346 = vmatprep.subr.mxu0 0.0
  %347 = vmatpush1.msra.mxu0 0.0
  %348 = vmatprep.subr.mxu0 0.0
  %349 = vmatpush1.msra.mxu0 0.0
  %350 = vmatprep.subr.mxu0 0.0
  %351 = vmatpush1.msra.mxu0 0.0
  %352 = vmatprep.subr.mxu0 0.0
  %353 = vmatpush1.msra.mxu0 0.0
  %354 = vmatprep.subr.mxu0 0.0
  %355 = vmatpush1.msra.mxu0 0.0
  %356 = vmatprep.subr.mxu0 0.0
  %357 = vmatpush1.msra.mxu0 0.0
  %358 = vmatprep.subr.mxu0 0.0
  %359 = vmatpush1.msra.mxu0 0.0
  %360 = vmatprep.subr.mxu0 0.0
  %361 = vmatpush1.msra.mxu0 0.0
  %362 = vmatprep.mubr.f32.mxu0 0.0
  %363 = vmatmul.mubr.f32.gmra.mrb[0].mxu0 %v296
  %v364 = vpop.f32.mrb[0].mxu0
  %v365 = vadd.f32 %v293, %v364
  %v366 = vpop.f32.mrb[0].mxu0
  %367 = vdwg.mxu0
  %v368 = vlaneseq
  %v369 = vshrl.u32 %v368, 7
  %vm370 = vcmp.ge.s32.totalorder %v369, 4
  %v371 = vmax.f32 %v365, -20.0
  %v372 = vmin.f32 %v371, 2.0
  %v373 = vsel %vm370, %v372, %v365
  %vm374 = vcmask 64512
  %375 = vst.msk [vmem:[%s7] sm:$0xff] %vm374, %v373
  // Predicated region
  $region30: #{policy_forward.1} parent=0 // pred_check
    _
  $region31: #{policy_forward.1} parent=0 // pred_check_branch
    %377 = sbr.rel (0) target = $region33
  $region32: #{policy_forward.1} parent=0 // pred_region
    _
  $region33: #{policy_forward.1} parent=0 // pred_fallthru
    _
  // Predicated region
  $region34: #{policy_forward.1} parent=0 // pred_check
    _
  $region35: #{policy_forward.1} parent=0 // pred_check_branch
    %379 = sbr.rel (0) target = $region37
  $region36: #{policy_forward.1} parent=0 // pred_region
    _
  $region37: #{policy_forward.1} parent=0 // pred_fallthru
    _

</llo_original>
